<compile_context>
chip_gen: v7x
topology: tpu7x:2x2x1
jax: 0.10.0
libtpu: 0.0.40
codegen_flags: <defaults>
</compile_context>

<pallas_src>
from functools import partial

import jax
import jax.numpy as jnp
import numpy as np
from jax import lax
from jax.experimental import pallas as pl
from jax.experimental.pallas import tpu as pltpu


def _round_up(x, m):
    return ((x + m - 1) // m) * m


def _mixer_kernel(p_ref, w_ref, b_ref, o_ref):
    # One fused matmul over the folded linear chain (activation=None default).
    # bf16 operands, f32 accumulation on the MXU, lane-dense bf16 store.
    acc = jnp.dot(p_ref[...], w_ref[...], preferred_element_type=jnp.float32)
    o_ref[...] = (acc + b_ref[...]).astype(o_ref.dtype)


@partial(jax.jit, static_argnames=("stride", "residual", "tm"))
def conv_stride_mixer(x, params, *, stride, residual=True, tm=2048):
    """x: [B, C, H, W] float32 (NCHW). Returns [B, C, Hout, Wout]."""
    B, C, H, W = x.shape
    s = stride
    K = 2 * s
    Hc = params["w_patch"].shape[0]
    Ho = (H - K) // s + 1
    Wo = (W - K) // s + 1
    Hb, Wb = Ho + 1, Wo + 1                 # transposed-conv output blocks
    Hout, Wout = Hb * s, Wb * s
    Din = C * K * K                          # = 4 * (s*s*C): patch = 2x2 blocks
    N = B * Ho * Wo
    f32 = jnp.float32

    # ---- fold the whole linear chain into one [Din, Din] matrix + bias ------
    # TODO(synk): if activation is ever non-None, split the fold at the
    # activation (keep W_patch/b_patch separate, fold only W_conv into W_unpatch).
    # Column ordering is (qh, qw, rh, rw, c) with kh = qh*s + rh, kw = qw*s + rw
    # to match the blocked channels-last im2col below.
    w1 = params["w_patch"].reshape(Hc, C, 2, s, 2, s)
    w1 = jnp.transpose(w1, (2, 4, 3, 5, 1, 0)).reshape(Din, Hc).astype(f32)
    b1 = params["b_patch"].reshape(1, Hc).astype(f32)
    w2 = params["w_conv"].reshape(Hc, Hc).T.astype(f32)
    b2 = params["b_conv"].reshape(1, Hc).astype(f32)
    wt = params["w_unpatch"].reshape(Hc, C, 2, s, 2, s)
    wt = jnp.transpose(wt, (0, 2, 4, 3, 5, 1)).reshape(Hc, Din).astype(f32)
    w_fused = w1 @ w2 @ wt                   # [Din, Din]
    b_fused = (b1 @ w2 + b2) @ wt            # [1, Din]

    # ---- lane-dense packing: r patch rows per kernel row ---------------------
    r = max(1, 128 // Din)                   # 1 if Din >= 128
    dp_in = r * Din
    Dp = _round_up(dp_in, 128)
    w_big = jnp.kron(jnp.eye(r, dtype=f32), w_fused)            # block diagonal
    w_big = jnp.pad(w_big, ((0, Dp - dp_in), (0, Dp - dp_in)))
    b_big = jnp.pad(jnp.tile(b_fused, (1, r)), ((0, 0), (0, Dp - dp_in)))

    # ---- im2col glue: blocked channels-last view, 4 dense block slices ------
    xt = jnp.transpose(x, (0, 2, 3, 1)).astype(f32)             # [B, H, W, C]
    xb = xt[:, :Hb * s, :Wb * s, :].reshape(B, Hb, s, Wb, s, C)
    xb = jnp.transpose(xb, (0, 1, 3, 2, 4, 5))                  # [B,Hb,Wb,s,s,C]
    quads = [xb[:, qh:qh + Ho, qw:qw + Wo]
             for qh in range(2) for qw in range(2)]
    patches = jnp.stack(quads, axis=3).reshape(N, Din).astype(jnp.bfloat16)

    m_raw = pl.cdiv(N, r)                    # packed rows needed
    nblk = max(1, -(-m_raw // tm))           # row tiles
    tm_eff = _round_up(-(-m_raw // nblk), 16)  # balanced, bf16-sublane aligned
    m_pad = nblk * tm_eff
    n_pad = m_pad * r
    patches = jnp.pad(patches, ((0, n_pad - N), (0, 0)))
    patches = patches.reshape(m_pad, dp_in)
    patches = jnp.pad(patches, ((0, 0), (0, Dp - dp_in)))

    out_pk = pl.pallas_call(
        _mixer_kernel,
        out_shape=jax.ShapeDtypeStruct((m_pad, Dp), jnp.bfloat16),
        grid=(nblk,),
        in_specs=[
            pl.BlockSpec((tm_eff, Dp), lambda i: (i, 0)),
            # Constant weight / bias blocks: index_map never changes, so they
            # are DMA'd once and stay resident in VMEM.
            pl.BlockSpec((Dp, Dp), lambda i: (0, 0)),
            pl.BlockSpec((1, Dp), lambda i: (0, 0)),
        ],
        out_specs=pl.BlockSpec((tm_eff, Dp), lambda i: (i, 0)),
        compiler_params=pltpu.CompilerParams(dimension_semantics=("parallel",)),
    )(patches, w_big.astype(jnp.bfloat16), b_big)

    # ---- col2im overlap-add: K = 2s  =>  exactly 4 dense block adds ---------
    out = out_pk[:, :dp_in].reshape(n_pad, Din)[:N]
    # per-pixel output ordered (qh, qw, rh, rw, c)
    out_r = out.reshape(B, Ho, Wo, 2, 2, s, s, C).astype(f32)

    b_un = params["b_unpatch"].astype(f32)                      # [C]
    if residual:
        if (Hout, Wout) != (H, W):
            raise ValueError("residual=True requires stride to divide H and W")
        yb = xb + b_un                       # fuse residual + output bias
    else:
        yb = jnp.zeros((B, Hb, Wb, s, s, C), f32) + b_un

    for qh in range(2):
        for qw in range(2):
            yb = yb.at[:, qh:qh + Ho, qw:qw + Wo].add(out_r[:, :, :, qh, qw])

    # blocked (b, hb, wb, rh, rw, c) -> NCHW
    y = jnp.transpose(yb, (0, 5, 1, 3, 2, 4)).reshape(B, C, Hout, Wout)
    return y


def ref_forward(x, p, s):
    """Pure-JAX reference using lax convolutions (PyTorch semantics)."""
    K = 2 * s
    dn = ("NCHW", "OIHW", "NCHW")
    y = lax.conv_general_dilated(x, p["w_patch"], (s, s), "VALID",
                                 dimension_numbers=dn)
    y = y + p["b_patch"][None, :, None, None]
    y = lax.conv_general_dilated(y, p["w_conv"], (1, 1), "VALID",
                                 dimension_numbers=dn)
    y = y + p["b_conv"][None, :, None, None]
    # ConvTranspose2d == input-dilated conv with flipped, (in,out)-swapped kernel
    w_t = jnp.flip(p["w_unpatch"], axis=(2, 3))
    w_t = jnp.transpose(w_t, (1, 0, 2, 3))  # (C, Hc, K, K) in OIHW
    y = lax.conv_general_dilated(y, w_t, (1, 1),
                                 [(K - 1, K - 1), (K - 1, K - 1)],
                                 lhs_dilation=(s, s),
                                 dimension_numbers=dn)
    y = y + p["b_unpatch"][None, :, None, None]
    return y + x


if __name__ == "__main__":
    B, C, H, W = 2, 4, 16, 16
    stride = 2
    Hc = C * stride          # hidden_channels default = channels * stride
    K = 2 * stride

    key = jax.random.PRNGKey(0)
    kx, k1, k2, k3, k4, k5, k6 = jax.random.split(key, 7)
    x = jax.random.normal(kx, (B, C, H, W), jnp.float32)
    params = {
        "w_patch":   0.1 * jax.random.normal(k1, (Hc, C, K, K), jnp.float32),
        "b_patch":   0.1 * jax.random.normal(k2, (Hc,), jnp.float32),
        "w_conv":    0.1 * jax.random.normal(k3, (Hc, Hc, 1, 1), jnp.float32),
        "b_conv":    0.1 * jax.random.normal(k4, (Hc,), jnp.float32),
        "w_unpatch": 0.1 * jax.random.normal(k5, (Hc, C, K, K), jnp.float32),
        "b_unpatch": 0.1 * jax.random.normal(k6, (C,), jnp.float32),
    }

    y = conv_stride_mixer(x, params, stride=stride)
    y = jax.block_until_ready(y)

    y_ref = ref_forward(x, params, stride)
    np.testing.assert_allclose(np.asarray(y), np.asarray(y_ref),
                               rtol=2e-2, atol=2e-2)
    print("KERNEL_OK")
</pallas_src>

<mosaic_0001>
module attributes {stable_mosaic.version = 11 : i64} {
  func.func @_mixer_kernel(%arg0: i32, %arg1: memref<64x128xbf16, #tpu.memory_space<vmem>>, %arg2: memref<128x128xbf16, #tpu.memory_space<vmem>>, %arg3: memref<1x128xf32, #tpu.memory_space<vmem>>, %arg4: memref<64x128xbf16, #tpu.memory_space<vmem>>) attributes {dimension_semantics = [#tpu.dimension_semantics<parallel>], iteration_bounds = array<i64: 1>, scalar_prefetch = 0 : i64, scratch_operands = 0 : i64, tpu.core_type = #tpu.core_type<tc>, window_params = [{transform_indices = @transform_0, window_bounds = array<i64: 64, 128>}, {pipeline_mode = #tpu.pipeline_mode<synchronous>, transform_indices = @transform_1, window_bounds = array<i64: 128, 128>}, {pipeline_mode = #tpu.pipeline_mode<synchronous>, transform_indices = @transform_2, window_bounds = array<i64: 1, 128>}, {transform_indices = @transform_3, window_bounds = array<i64: 64, 128>}]} {
    %c0 = arith.constant 0 : index
    %c0_0 = arith.constant 0 : index
    %0 = vector.load %arg1[%c0, %c0_0] : memref<64x128xbf16, #tpu.memory_space<vmem>>, vector<64x128xbf16>
    %c0_1 = arith.constant 0 : index
    %c0_2 = arith.constant 0 : index
    %1 = vector.load %arg2[%c0_1, %c0_2] : memref<128x128xbf16, #tpu.memory_space<vmem>>, vector<128x128xbf16>
    %cst = arith.constant dense<0.000000e+00> : vector<64x128xf32>
    %2 = tpu.matmul %0, %1, %cst {dimension_numbers = #tpu.dot_dimension_numbers<[1], [0], [0], [1], [0, 0, 1, 1], [], []>} : vector<64x128xbf16>, vector<128x128xbf16>, vector<64x128xf32> -> vector<64x128xf32>
    %c0_3 = arith.constant 0 : index
    %c0_4 = arith.constant 0 : index
    %3 = vector.load %arg3[%c0_3, %c0_4] : memref<1x128xf32, #tpu.memory_space<vmem>>, vector<1x128xf32>
    %4 = vector.broadcast %3 : vector<1x128xf32> to vector<64x128xf32>
    %5 = arith.addf %2, %4 : vector<64x128xf32>
    %6 = arith.truncf %5 : vector<64x128xf32> to vector<64x128xbf16>
    %c0_5 = arith.constant 0 : index
    %c0_6 = arith.constant 0 : index
    %7 = vector.load %arg4[%c0_5, %c0_6] : memref<64x128xbf16, #tpu.memory_space<vmem>>, vector<64x128xbf16>
    tpu.vector_store %arg4[%c0_5, %c0_6], %6 {strides = array<i32>} : memref<64x128xbf16, #tpu.memory_space<vmem>>, vector<64x128xbf16>,
    return
  }
  func.func @transform_0(%arg0: i32) -> (i32, i32) {
    %c0_i32 = arith.constant 0 : i32
    %c0_i32_0 = arith.constant 0 : i32
    return %arg0, %c0_i32 : i32, i32
  }
  func.func @transform_1(%arg0: i32) -> (i32, i32) {
    %c0_i32 = arith.constant 0 : i32
    %c0_i32_0 = arith.constant 0 : i32
    %c0_i32_1 = arith.constant 0 : i32
    return %c0_i32, %c0_i32_0 : i32, i32
  }
  func.func @transform_2(%arg0: i32) -> (i32, i32) {
    %c0_i32 = arith.constant 0 : i32
    %c0_i32_0 = arith.constant 0 : i32
    %c0_i32_1 = arith.constant 0 : i32
    return %c0_i32, %c0_i32_0 : i32, i32
  }
  func.func @transform_3(%arg0: i32) -> (i32, i32) {
    %c0_i32 = arith.constant 0 : i32
    %c0_i32_0 = arith.constant 0 : i32
    return %arg0, %c0_i32 : i32, i32
  }
}

</mosaic_0001>

<llo_original>
// kernel: conv_stride_mixer.1
$region0: #{conv_stride_mixer.1}
  #allocation0 [shape = 'u32[]', space=smem, size = 0x4, offset = 0x4, fixed_abs, tag = 'smem constant byte address 0x4 - core index']
  #allocation1 [shape = 'u32[144,128]{1,0:T(1,128)}', space=vmem, size = 0x12000, scoped, tag = 'internal scratch']
  %s0 = inlined_call_operand.vmem [shape: bf16[64,128], index: 0, kind: input, shape index: {}]
  %s1 = inlined_call_operand.vmem [shape: bf16[128,128], index: 1, kind: input, shape index: {}]
  %s2 = inlined_call_operand.vmem [shape: f32[1,128], index: 2, kind: input, shape index: {}]
  %s3 = inlined_call_operand.vmem [shape: bf16[64,128], index: 3, kind: output, shape index: {}]
  %s4 = sld [smem:[#allocation0]]
  $region22: #{conv_stride_mixer.1} parent=0
    _
  %s6 = ssub.s32 1, %s4
  %s7 = scalar_select 0, %s6, %s4
  // Predicated region
  $region2: #{conv_stride_mixer.1} parent=0 // pred_check
    _
  $region3: #{conv_stride_mixer.1} parent=0 // pred_check_branch
    %9 = sbr.rel (0) target = $region5
  $region4: #{conv_stride_mixer.1} parent=0 // pred_region
    _
  $region5: #{conv_stride_mixer.1} parent=0 // pred_fallthru
    _
  // Predicated region
  $region6: #{conv_stride_mixer.1} parent=0 // pred_check
    _
  $region7: #{conv_stride_mixer.1} parent=0 // pred_check_branch
    %11 = sbr.rel (0) target = $region9
  $region8: #{conv_stride_mixer.1} parent=0 // pred_region
    _
  $region9: #{conv_stride_mixer.1} parent=0 // pred_fallthru
    _
  // Predicated region
  $region10: #{conv_stride_mixer.1} parent=0 // pred_check
    _
  $region11: #{conv_stride_mixer.1} parent=0 // pred_check_branch
    %13 = sbr.rel (0) target = $region13
  $region12: #{conv_stride_mixer.1} parent=0 // pred_region
    _
  $region13: #{conv_stride_mixer.1} parent=0 // pred_fallthru
    _
  %v15 = vld [vmem:[%s0] sm:$0xf]
  %v16 = vld [vmem:[%s0 + $0x4] sm:$0xf]
  %v17 = vld [vmem:[%s0 + $0x8] sm:$0xf]
  %v18 = vld [vmem:[%s0 + $0xc] sm:$0xf]
  %v19 = vld [vmem:[%s0 + $0x10] sm:$0xf]
  %v20 = vld [vmem:[%s0 + $0x14] sm:$0xf]
  %v21 = vld [vmem:[%s0 + $0x18] sm:$0xf]
  %v22 = vld [vmem:[%s0 + $0x1c] sm:$0xf]
  %v23 = vld [vmem:[%s1] sm:$0xf]
  %v24 = vld [vmem:[%s1 + $0x4] sm:$0xf]
  %v25 = vld [vmem:[%s1 + $0x8] sm:$0xf]
  %v26 = vld [vmem:[%s1 + $0xc] sm:$0xf]
  %v27 = vld [vmem:[%s1 + $0x10] sm:$0xf]
  %v28 = vld [vmem:[%s1 + $0x14] sm:$0xf]
  %v29 = vld [vmem:[%s1 + $0x18] sm:$0xf]
  %v30 = vld [vmem:[%s1 + $0x1c] sm:$0xf]
  %v31 = vld [vmem:[%s1 + $0x20] sm:$0xf]
  %v32 = vld [vmem:[%s1 + $0x24] sm:$0xf]
  %v33 = vld [vmem:[%s1 + $0x28] sm:$0xf]
  %v34 = vld [vmem:[%s1 + $0x2c] sm:$0xf]
  %v35 = vld [vmem:[%s1 + $0x30] sm:$0xf]
  %v36 = vld [vmem:[%s1 + $0x34] sm:$0xf]
  %v37 = vld [vmem:[%s1 + $0x38] sm:$0xf]
  %v38 = vld [vmem:[%s1 + $0x3c] sm:$0xf]
  %v39 = vld [vmem:[%s2] sm:$0x1]
  %v41 = vlaneseq
  %v42 = vshrl.u32 %v41, 7
  %v43 = vsub.s32 0, %v42
  %v44 = vrot.slane %v39, %v43
  %v54 = vunpack.c.l.b16 %v15
  %v55 = vunpack.c.l.b16 %v16
  %v56 = vunpack.c.l.b16 %v17
  %v57 = vunpack.c.l.b16 %v18
  %v58 = vunpack.c.l.b16 %v19
  %v59 = vunpack.c.l.b16 %v20
  %v60 = vunpack.c.l.b16 %v21
  %v61 = vunpack.c.l.b16 %v22
  %v62 = vpack.c.b16 %v55, %v54
  %v63 = vpack.c.b16 %v57, %v56
  %v64 = vpack.c.b16 %v59, %v58
  %v65 = vpack.c.b16 %v61, %v60
  %v86 = vunpack.c.l.b16 %v23
  %v87 = vunpack.c.l.b16 %v24
  %v88 = vunpack.c.l.b16 %v25
  %v89 = vunpack.c.l.b16 %v26
  %v90 = vunpack.c.l.b16 %v27
  %v91 = vunpack.c.l.b16 %v28
  %v92 = vunpack.c.l.b16 %v29
  %v93 = vunpack.c.l.b16 %v30
  %v94 = vunpack.c.l.b16 %v31
  %v95 = vunpack.c.l.b16 %v32
  %v96 = vunpack.c.l.b16 %v33
  %v97 = vunpack.c.l.b16 %v34
  %v98 = vunpack.c.l.b16 %v35
  %v99 = vunpack.c.l.b16 %v36
  %v100 = vunpack.c.l.b16 %v37
  %v101 = vunpack.c.l.b16 %v38
  %v102 = vpack.c.b16 %v87, %v86
  %v103 = vpack.c.b16 %v89, %v88
  %v104 = vpack.c.b16 %v91, %v90
  %v105 = vpack.c.b16 %v93, %v92
  %v106 = vpack.c.b16 %v95, %v94
  %v107 = vpack.c.b16 %v97, %v96
  %v108 = vpack.c.b16 %v99, %v98
  %v109 = vpack.c.b16 %v101, %v100
  %118 = vmatprep.subr.bf16.mxu0 0
  %119 = vmatpush1.bf16.msra.mxu0 %v102
  %120 = vmatprep.subr.bf16.mxu0 0
  %121 = vmatpush1.bf16.msra.mxu0 %v103
  %122 = vmatprep.subr.bf16.mxu0 0
  %123 = vmatpush1.bf16.msra.mxu0 %v104
  %124 = vmatprep.subr.bf16.mxu0 0
  %125 = vmatpush1.bf16.msra.mxu0 %v105
  %126 = vmatprep.subr.bf16.mxu0 0
  %127 = vmatpush1.bf16.msra.mxu0 %v106
  %128 = vmatprep.subr.bf16.mxu0 0
  %129 = vmatpush1.bf16.msra.mxu0 %v107
  %130 = vmatprep.subr.bf16.mxu0 0
  %131 = vmatpush1.bf16.msra.mxu0 %v108
  %132 = vmatprep.subr.bf16.mxu0 0
  %133 = vmatpush1.bf16.msra.mxu0 %v109
  %134 = vmatprep.subr.bf16.mxu0 0
  %135 = vmatpush1.bf16.msra.mxu0 0
  %136 = vmatprep.subr.bf16.mxu0 0
  %137 = vmatpush1.bf16.msra.mxu0 0
  %138 = vmatprep.subr.bf16.mxu0 0
  %139 = vmatpush1.bf16.msra.mxu0 0
  %140 = vmatprep.subr.bf16.mxu0 0
  %141 = vmatpush1.bf16.msra.mxu0 0
  %142 = vmatprep.subr.bf16.mxu0 0
  %143 = vmatpush1.bf16.msra.mxu0 0
  %144 = vmatprep.subr.bf16.mxu0 0
  %145 = vmatpush1.bf16.msra.mxu0 0
  %146 = vmatprep.subr.bf16.mxu0 0
  %147 = vmatpush1.bf16.msra.mxu0 0
  %148 = vmatprep.subr.bf16.mxu0 0
  %149 = vmatpush1.bf16.msra.mxu0 0
  %150 = vmatprep.mubr.bf16.mxu0 0
  %151 = vmatmul.mubr.bf16.gmra.mrb[0].mxu0 %v62
  %v152 = vpop.f32.mrb[0].mxu0
  %v153 = vadd.f32 %v44, %v152
  %v154 = vpop.f32.mrb[0].mxu0
  %v155 = vpop.f32.mrb[0].mxu0
  %v156 = vadd.f32 %v44, %v155
  %v157 = vpop.f32.mrb[0].mxu0
  %158 = vmatprep.mubr.bf16.mxu0 0
  %159 = vmatmul.mubr.bf16.gmra.mrb[0].mxu0 %v63
  %v160 = vpop.f32.mrb[0].mxu0
  %v161 = vadd.f32 %v44, %v160
  %v162 = vpop.f32.mrb[0].mxu0
  %v163 = vpop.f32.mrb[0].mxu0
  %v164 = vadd.f32 %v44, %v163
  %v165 = vpop.f32.mrb[0].mxu0
  %166 = vmatprep.mubr.bf16.mxu0 0
  %167 = vmatmul.mubr.bf16.gmra.mrb[0].mxu0 %v64
  %v168 = vpop.f32.mrb[0].mxu0
  %v169 = vadd.f32 %v44, %v168
  %v170 = vpop.f32.mrb[0].mxu0
  %v171 = vpop.f32.mrb[0].mxu0
  %v172 = vadd.f32 %v44, %v171
  %v173 = vpop.f32.mrb[0].mxu0
  %174 = vmatprep.mubr.bf16.mxu0 0
  %175 = vmatmul.mubr.bf16.gmra.mrb[0].mxu0 %v65
  %v176 = vpop.f32.mrb[0].mxu0
  %v177 = vadd.f32 %v44, %v176
  %v178 = vpop.f32.mrb[0].mxu0
  %v179 = vpop.f32.mrb[0].mxu0
  %v180 = vadd.f32 %v44, %v179
  %v181 = vpop.f32.mrb[0].mxu0
  %182 = vdwg.mxu0
  %v183 = vpack.c.bf16 %v156, %v153
  %v184 = vpack.c.bf16 %v164, %v161
  %v185 = vpack.c.bf16 %v172, %v169
  %v186 = vpack.c.bf16 %v180, %v177
  %v191 = vunpack.c.l.b16 %v183
  %v192 = vunpack.c.h.b16 %v183
  %v193 = vunpack.c.l.b16 %v184
  %v194 = vunpack.c.h.b16 %v184
  %v195 = vunpack.c.l.b16 %v185
  %v196 = vunpack.c.h.b16 %v185
  %v197 = vunpack.c.l.b16 %v186
  %v198 = vunpack.c.h.b16 %v186
  %v199 = vpack.c.b16 %v191, %v191
  %v200 = vpack.c.b16 %v192, %v192
  %v201 = vpack.c.b16 %v193, %v193
  %v202 = vpack.c.b16 %v194, %v194
  %v203 = vpack.c.b16 %v195, %v195
  %v204 = vpack.c.b16 %v196, %v196
  %v205 = vpack.c.b16 %v197, %v197
  %v206 = vpack.c.b16 %v198, %v198
  %215 = vst [vmem:[%s3] sm:$0xf] %v199
  %216 = vst [vmem:[%s3 + $0x4] sm:$0xf] %v200
  %217 = vst [vmem:[%s3 + $0x8] sm:$0xf] %v201
  %218 = vst [vmem:[%s3 + $0xc] sm:$0xf] %v202
  %219 = vst [vmem:[%s3 + $0x10] sm:$0xf] %v203
  %220 = vst [vmem:[%s3 + $0x14] sm:$0xf] %v204
  %221 = vst [vmem:[%s3 + $0x18] sm:$0xf] %v205
  %222 = vst [vmem:[%s3 + $0x1c] sm:$0xf] %v206
  // Predicated region
  $region14: #{conv_stride_mixer.1} parent=0 // pred_check
    _
  $region15: #{conv_stride_mixer.1} parent=0 // pred_check_branch
    %224 = sbr.rel (0) target = $region17
  $region16: #{conv_stride_mixer.1} parent=0 // pred_region
    _
  $region17: #{conv_stride_mixer.1} parent=0 // pred_fallthru
    _
  // Predicated region
  $region18: #{conv_stride_mixer.1} parent=0 // pred_check
    _
  $region19: #{conv_stride_mixer.1} parent=0 // pred_check_branch
    %226 = sbr.rel (0) target = $region21
  $region20: #{conv_stride_mixer.1} parent=0 // pred_region
    _
  $region21: #{conv_stride_mixer.1} parent=0 // pred_fallthru
    _

</llo_original>
